<compile_context>
chip_gen: v5e
topology: v5e:2x2
jax: 0.10.0
libtpu: 0.0.40
codegen_flags: <defaults>
</compile_context>

<pallas_src>
import functools

import jax
import jax.numpy as jnp
from jax.experimental import pallas as pl
from jax.experimental.pallas import tpu as pltpu


def _round_up(x, m):
    return ((x + m - 1) // m) * m


def _global_sa_kernel(off_ref, glo_ref, ghi_ref,                 # scalar-prefetch (SMEM)
                      xin_ref, w1_ref, b1_ref, w2_ref,           # inputs (VMEM)
                      out_ref, *, tile_n, tiles_per_core):
    """One N-tile: 2 matmuls (+ layer-1 bias/ReLU) and segment running-max pooling."""
    c = pl.program_id(0)                 # core index (parallel axis)
    t = pl.program_id(1)                 # tile index within this core (reduction axis)
    g = c * tiles_per_core + t           # global tile index

    @pl.when(t == 0)
    def _init():
        out_ref[...] = jnp.full(out_ref.shape, -jnp.inf, out_ref.dtype)

    x = xin_ref[...]                                                     # (tile_n, C_pad) bf16

    # Layer 1: Linear -> ReLU          (BN1 is folded into layer 2 in the wrapper)
    h = jnp.dot(x, w1_ref[...], preferred_element_type=jnp.float32) + b1_ref[...]
    h = jnp.maximum(h, 0.0)

    # Layer 2 pre-activation with BN1 scale and sign(s2) folded into W2''.
    # Bias/ReLU/BN2 are applied on the pooled block in the wrapper (they commute with max).
    z = jnp.dot(h.astype(w2_ref.dtype), w2_ref[...],
                preferred_element_type=jnp.float32)                      # (tile_n, H2_pad) f32

    rows = jax.lax.broadcasted_iota(jnp.int32, (tile_n, 1), 0) + g * tile_n

    def pool_one_graph(b, carry):
        start = off_ref[b]
        end = off_ref[b + 1]
        m = (rows >= start) & (rows < end)                               # (tile_n, 1)
        seg_max = jnp.max(jnp.where(m, z, -jnp.inf), axis=0, keepdims=True)  # (1, H2_pad)
        cur = out_ref[pl.ds(b, 1), :]                                    # single dynamic row
        out_ref[pl.ds(b, 1), :] = jnp.maximum(cur, seg_max)
        return carry

    glo = glo_ref[g]
    ghi = ghi_ref[g]

    @pl.when(glo == ghi)            # common case: tile overlaps exactly one graph
    def _single():
        pool_one_graph(glo, 0)

    @pl.when(glo < ghi)             # tile straddles several graphs
    def _multi():
        jax.lax.fori_loop(glo, ghi + 1, pool_one_graph, 0)
    # Padding tiles get (glo, ghi) = (1, 0) so both branches are skipped.


def init_params(key, c_in, h1, h2):
    """Deterministic synthetic parameters (Linear W/b, BN gamma/beta per layer)."""
    ks = jax.random.split(key, 8)
    return {
        "w1": jax.random.normal(ks[0], (c_in, h1), jnp.float32) * 0.2,
        "b1": jax.random.normal(ks[1], (1, h1), jnp.float32) * 0.05,
        "g1": 1.0 + 0.1 * jax.random.normal(ks[2], (1, h1), jnp.float32),
        "be1": 0.1 * jax.random.normal(ks[3], (1, h1), jnp.float32),
        "w2": jax.random.normal(ks[4], (h1, h2), jnp.float32) * 0.2,
        "b2": jax.random.normal(ks[5], (1, h2), jnp.float32) * 0.05,
        "g2": 1.0 + 0.1 * jax.random.normal(ks[6], (1, h2), jnp.float32),
        "be2": 0.1 * jax.random.normal(ks[7], (1, h2), jnp.float32),
    }


def _prepare_params(params, c_pad, h1_pad, h2_pad, matmul_dtype, eps=1e-5):
    """Fold eval-mode BN1 into Linear2, lane-pad everything, cast matmul weights."""
    h1 = params["w1"].shape[1]
    s1 = params["g1"] / jnp.sqrt(1.0 + eps)                  # BN(running_mean=0, var=1)
    t1 = params["be1"]
    s2 = params["g2"] / jnp.sqrt(1.0 + eps)
    t2 = params["be2"]

    w2_folded = params["w2"] * jnp.reshape(s1, (h1, 1))      # scale rows of W2 by s1
    b2_folded = params["b2"] + t1 @ params["w2"]             # shift folded through Linear2
    sigma = jnp.where(s2 >= 0.0, 1.0, -1.0)                  # sign of BN2 scale per channel

    def pad2(a, r, c):
        return jnp.pad(a, ((0, r - a.shape[0]), (0, c - a.shape[1])))

    return {
        "w1": pad2(params["w1"], c_pad, h1_pad).astype(matmul_dtype),
        "b1": pad2(params["b1"], 1, h1_pad).astype(jnp.float32),
        "w2": pad2(w2_folded, h1_pad, h2_pad).astype(matmul_dtype),   # unsigned, BN1-folded
        "b2": pad2(b2_folded, 1, h2_pad).astype(jnp.float32),
        "s2": pad2(s2, 1, h2_pad).astype(jnp.float32),
        "t2": pad2(t2, 1, h2_pad).astype(jnp.float32),
        "sigma": pad2(sigma, 1, h2_pad).astype(jnp.float32),
    }


def _vmem_limit_bytes(tile_n, c_pad, h1_pad, h2_pad, b_pad, num_cores):
    """Rough per-step VMEM need (double-buffered inputs + f32 intermediates) with headroom."""
    bf16, f32 = 2, 4
    stream = 2 * tile_n * c_pad * bf16                                   # double-buffered x
    weights = 2 * (c_pad * h1_pad + h1_pad * h2_pad) * bf16 + 2 * h1_pad * f32
    acc = 2 * b_pad * h2_pad * f32
    inter = tile_n * (2 * h1_pad * f32 + h1_pad * bf16 + 2 * h2_pad * f32)
    est = stream + weights + acc + inter
    return int(min(max(2 * est, 16 * 1024 * 1024), 48 * 1024 * 1024))    # safe on v7x (64 MiB)


def global_sa_module(x, pos, batch, params, num_graphs, *,
                     tile_n=4096, num_cores=2, matmul_dtype=jnp.bfloat16):
    """JAX wrapper reproducing GlobalSAModule.forward (eval-mode BN).

    Assumes `batch` is sorted / contiguous per graph (PyG batching convention).
    tile_n=4096 keeps per-step VMEM ~10 MiB (fits all of v5e/v6e/v7x); num_cores=2 splits
    the reduction across v7x's two TensorCores (a cheap serial outer loop elsewhere).
    """
    xin = jnp.concatenate([x, pos], axis=1).astype(jnp.float32)          # (N, C_in)
    n, c_in = xin.shape
    h2 = params["w2"].shape[1]

    c_pad = _round_up(c_in, 8)                        # small K dim: 8 lanes is enough
    h1_pad = _round_up(params["w1"].shape[1], 128)    # lane-dense hidden
    h2_pad = _round_up(h2, 128)                       # lane-dense output
    b_pad = _round_up(max(num_graphs, 1), 8)

    num_cores = max(1, int(num_cores))
    tile_n = int(min(tile_n, _round_up(n, 8)))
    num_tiles = -(-n // tile_n)
    tiles_per_core = -(-num_tiles // num_cores)
    total_tiles = num_cores * tiles_per_core
    n_pad = total_tiles * tile_n

    prep = _prepare_params(params, c_pad, h1_pad, h2_pad, matmul_dtype)
    # Fold sign(s2) into W2 columns: pooling max(sigma*z) recovers max(z) (s2>=0) or min(z)
    # (s2<0), so the bias/ReLU/BN2 epilogue can be applied after pooling for ALL channels.
    w2_signed = (prep["w2"].astype(jnp.float32) * prep["sigma"]).astype(matmul_dtype)
    xin_p = jnp.pad(xin, ((0, n_pad - n), (0, c_pad - c_in))).astype(matmul_dtype)

    # Segment offsets (scalar prefetch): off[b] = first row of graph b, off[B] = N.
    batch = batch.astype(jnp.int32)
    off = jnp.searchsorted(batch, jnp.arange(num_graphs + 1, dtype=jnp.int32)
                           ).astype(jnp.int32)

    # Per-tile first/last graph id; padding tiles get an empty (1, 0) range.
    t_start = jnp.arange(total_tiles, dtype=jnp.int32) * tile_n
    t_last = jnp.minimum(t_start + tile_n - 1, n - 1)

    def graph_of(r):
        return jnp.clip(jnp.searchsorted(off, r, side="right") - 1,
                        0, num_graphs - 1).astype(jnp.int32)

    in_range = t_start < n
    g_lo = jnp.where(in_range, graph_of(jnp.minimum(t_start, n - 1)), jnp.int32(1))
    g_hi = jnp.where(in_range, graph_of(t_last), jnp.int32(0))

    kernel = functools.partial(_global_sa_kernel, tile_n=tile_n,
                               tiles_per_core=tiles_per_core)

    grid_spec = pltpu.PrefetchScalarGridSpec(
        num_scalar_prefetch=3,
        grid=(num_cores, tiles_per_core),
        in_specs=[
            pl.BlockSpec((tile_n, c_pad),
                         lambda c, t, *_: (c * tiles_per_core + t, 0)),   # streamed xin tile
            pl.BlockSpec((c_pad, h1_pad), lambda c, t, *_: (0, 0)),       # resident W1
            pl.BlockSpec((1, h1_pad), lambda c, t, *_: (0, 0)),           # resident b1
            pl.BlockSpec((h1_pad, h2_pad), lambda c, t, *_: (0, 0)),      # resident W2''
        ],
        # Per-core accumulator slab: resident across the reduction (t) axis.
        out_specs=pl.BlockSpec((None, b_pad, h2_pad), lambda c, t, *_: (c, 0, 0)),
    )

    pooled_pad = pl.pallas_call(
        kernel,
        out_shape=jax.ShapeDtypeStruct((num_cores, b_pad, h2_pad), jnp.float32),
        grid_spec=grid_spec,
        compiler_params=pltpu.CompilerParams(
            dimension_semantics=("parallel", "arbitrary"),
            vmem_limit_bytes=_vmem_limit_bytes(tile_n, c_pad, h1_pad, h2_pad,
                                               b_pad, num_cores)),
    )(off, g_lo, g_hi, xin_p, prep["w1"], prep["b1"], w2_signed)

    # Combine the per-core partial maxima, then apply the hoisted layer-2 epilogue
    # (bias -> ReLU -> BN2 scale/shift) on the tiny pooled block.
    pooled_signed = jnp.max(pooled_pad, axis=0)[:num_graphs]             # (B, H2_pad)
    z = pooled_signed * prep["sigma"] + prep["b2"]                       # undo sign fold + bias
    pooled = prep["s2"] * jnp.maximum(z, 0.0) + prep["t2"]               # ReLU + eval-mode BN2
    pooled = pooled[:, :h2]

    # TODO(synk): graphs with zero points are filled with 0 here; some PyG/scatter versions
    # use dtype-min instead — pick the desired fill if that case matters.
    seg_cnt = off[1:num_graphs + 1] - off[:num_graphs]
    pooled = jnp.where(seg_cnt[:, None] > 0, pooled, 0.0)

    pos_out = jnp.zeros((num_graphs, 3), dtype=pos.dtype)
    batch_out = jnp.arange(num_graphs, dtype=batch.dtype)
    return pooled, pos_out, batch_out


if __name__ == "__main__":
    key = jax.random.PRNGKey(0)
    k_x, k_pos, k_p = jax.random.split(key, 3)

    N = 64           # total points across all graphs
    F = 4            # per-point feature channels
    B = 2            # number of graphs in the batch
    H1, H2 = 32, 64  # MLP hidden / output widths

    x = jax.random.normal(k_x, (N, F), jnp.float32)
    pos = jax.random.normal(k_pos, (N, 3), jnp.float32)
    batch = jnp.concatenate([
        jnp.zeros((N // 2,), jnp.int32),
        jnp.ones((N - N // 2,), jnp.int32),
    ])  # contiguous per-graph assignment (PyG convention)

    params = init_params(k_p, F + 3, H1, H2)

    out_x, out_pos, out_batch = global_sa_module(x, pos, batch, params, B)
    jax.block_until_ready((out_x, out_pos, out_batch))

    # Pure-JAX reference using the same folded/padded/bf16 parameter preparation.
    def ref(x, pos, batch, params, num_graphs):
        xin = jnp.concatenate([x, pos], axis=1).astype(jnp.float32)
        c_in = xin.shape[1]
        c_pad = _round_up(c_in, 8)
        h1_pad = _round_up(params["w1"].shape[1], 128)
        h2_pad = _round_up(params["w2"].shape[1], 128)
        prep = _prepare_params(params, c_pad, h1_pad, h2_pad, jnp.bfloat16)
        xb = jnp.pad(xin, ((0, 0), (0, c_pad - c_in))).astype(jnp.bfloat16)
        h = jnp.maximum(jnp.dot(xb, prep["w1"], preferred_element_type=jnp.float32)
                        + prep["b1"], 0.0)
        z = jnp.dot(h.astype(jnp.bfloat16), prep["w2"],
                    preferred_element_type=jnp.float32) + prep["b2"]
        hv = prep["s2"] * jnp.maximum(z, 0.0) + prep["t2"]
        m = batch[None, :, None] == jnp.arange(num_graphs)[:, None, None]
        pooled = jnp.max(jnp.where(m, hv[None], -jnp.inf), axis=1)
        return pooled[:, :params["w2"].shape[1]]

    expected = ref(x, pos, batch, params, B)

    assert out_x.shape == (B, H2) and out_pos.shape == (B, 3) and out_batch.shape == (B,)
    assert bool(jnp.all(out_pos == 0.0))
    assert bool(jnp.all(out_batch == jnp.arange(B, dtype=out_batch.dtype)))
    assert jnp.allclose(out_x, expected, atol=1e-3, rtol=1e-3)

    print("KERNEL_OK")
</pallas_src>

<mosaic_0001>
module attributes {stable_mosaic.version = 11 : i64} {
  func.func @_global_sa_kernel(%arg0: i32, %arg1: i32, %arg2: memref<3xi32, #tpu.memory_space<smem>>, %arg3: memref<2xi32, #tpu.memory_space<smem>>, %arg4: memref<2xi32, #tpu.memory_space<smem>>, %arg5: memref<64x8xbf16, #tpu.memory_space<vmem>>, %arg6: memref<8x128xbf16, #tpu.memory_space<vmem>>, %arg7: memref<1x128xf32, #tpu.memory_space<vmem>>, %arg8: memref<128x128xbf16, #tpu.memory_space<vmem>>, %arg9: memref<1x8x128xf32, #tpu.memory_space<vmem>>) attributes {dimension_semantics = [#tpu.dimension_semantics<parallel>, #tpu.dimension_semantics<arbitrary>], iteration_bounds = array<i64: 2, 1>, scalar_prefetch = 3 : i64, scratch_operands = 0 : i64, tpu.core_type = #tpu.core_type<tc>, window_params = [{transform_indices = @transform_0, window_bounds = array<i64: 64, 8>}, {pipeline_mode = #tpu.pipeline_mode<synchronous>, transform_indices = @transform_1, window_bounds = array<i64: 8, 128>}, {pipeline_mode = #tpu.pipeline_mode<synchronous>, transform_indices = @transform_2, window_bounds = array<i64: 1, 128>}, {pipeline_mode = #tpu.pipeline_mode<synchronous>, transform_indices = @transform_3, window_bounds = array<i64: 128, 128>}, {transform_indices = @transform_4, window_bounds = array<i64: 1, 8, 128>}]} {
    %c1_i32 = arith.constant 1 : i32
    %0 = arith.muli %arg0, %c1_i32 : i32
    %1 = arith.addi %0, %arg1 : i32
    %c0_i32 = arith.constant 0 : i32
    %2 = arith.cmpi eq, %arg1, %c0_i32 : i32
    %3 = arith.extui %2 : i1 to i32
    %c0_i32_0 = arith.constant 0 : i32
    %4 = arith.cmpi ne, %3, %c0_i32_0 : i32
    scf.if %4 {
      %cst_12 = arith.constant 0xFF800000 : f32
      %30 = vector.broadcast %cst_12 : f32 to vector<8x128xf32>
      %c0_13 = arith.constant 0 : index
      %c0_14 = arith.constant 0 : index
      %c0_15 = arith.constant 0 : index
      %31 = vector.load %arg9[%c0_13, %c0_14, %c0_15] : memref<1x8x128xf32, #tpu.memory_space<vmem>>, vector<1x8x128xf32>
      %32 = vector.shape_cast %31 : vector<1x8x128xf32> to vector<8x128xf32>
      %33 = vector.shape_cast %30 : vector<8x128xf32> to vector<1x8x128xf32>
      tpu.vector_store %arg9[%c0_13, %c0_14, %c0_15], %33 {strides = array<i32>} : memref<1x8x128xf32, #tpu.memory_space<vmem>>, vector<1x8x128xf32>,
    } else {
    }
    %c0 = arith.constant 0 : index
    %c0_1 = arith.constant 0 : index
    %5 = vector.load %arg5[%c0, %c0_1] : memref<64x8xbf16, #tpu.memory_space<vmem>>, vector<64x8xbf16>
    %c0_2 = arith.constant 0 : index
    %c0_3 = arith.constant 0 : index
    %6 = vector.load %arg6[%c0_2, %c0_3] : memref<8x128xbf16, #tpu.memory_space<vmem>>, vector<8x128xbf16>
    %cst = arith.constant dense<0.000000e+00> : vector<64x128xf32>
    %7 = tpu.matmul %5, %6, %cst {dimension_numbers = #tpu.dot_dimension_numbers<[1], [0], [0], [1], [0, 0, 1, 1], [], []>} : vector<64x8xbf16>, vector<8x128xbf16>, vector<64x128xf32> -> vector<64x128xf32>
    %c0_4 = arith.constant 0 : index
    %c0_5 = arith.constant 0 : index
    %8 = vector.load %arg7[%c0_4, %c0_5] : memref<1x128xf32, #tpu.memory_space<vmem>>, vector<1x128xf32>
    %9 = vector.broadcast %8 : vector<1x128xf32> to vector<64x128xf32>
    %10 = arith.addf %7, %9 : vector<64x128xf32>
    %cst_6 = arith.constant 0.000000e+00 : f32
    %11 = vector.broadcast %cst_6 : f32 to vector<64x128xf32>
    %12 = arith.maximumf %10, %11 : vector<64x128xf32>
    %13 = arith.truncf %12 : vector<64x128xf32> to vector<64x128xbf16>
    %c0_7 = arith.constant 0 : index
    %c0_8 = arith.constant 0 : index
    %14 = vector.load %arg8[%c0_7, %c0_8] : memref<128x128xbf16, #tpu.memory_space<vmem>>, vector<128x128xbf16>
    %cst_9 = arith.constant dense<0.000000e+00> : vector<64x128xf32>
    %15 = tpu.matmul %13, %14, %cst_9 {dimension_numbers = #tpu.dot_dimension_numbers<[1], [0], [0], [1], [0, 0, 1, 1], [], []>} : vector<64x128xbf16>, vector<128x128xbf16>, vector<64x128xf32> -> vector<64x128xf32>
    %16 = tpu.iota {dimensions = array<i32: 0>} : vector<64x1xi32>
    %c64_i32 = arith.constant 64 : i32
    %17 = arith.muli %1, %c64_i32 : i32
    %18 = vector.broadcast %17 : i32 to vector<64x1xi32>
    %19 = arith.addi %16, %18 : vector<64x1xi32>
    %20 = arith.index_cast %1 : i32 to index
    %21 = memref.load %arg3[%20] : memref<2xi32, #tpu.memory_space<smem>>
    %22 = arith.index_cast %1 : i32 to index
    %23 = memref.load %arg4[%22] : memref<2xi32, #tpu.memory_space<smem>>
    %24 = arith.cmpi eq, %21, %23 : i32
    %25 = arith.extui %24 : i1 to i32
    %c0_i32_10 = arith.constant 0 : i32
    %26 = arith.cmpi ne, %25, %c0_i32_10 : i32
    scf.if %26 {
      %30 = arith.index_cast %21 : i32 to index
      %31 = memref.load %arg2[%30] : memref<3xi32, #tpu.memory_space<smem>>
      %c1_i32_12 = arith.constant 1 : i32
      %32 = arith.addi %21, %c1_i32_12 : i32
      %33 = arith.index_cast %32 : i32 to index
      %34 = memref.load %arg2[%33] : memref<3xi32, #tpu.memory_space<smem>>
      %35 = vector.broadcast %31 : i32 to vector<64x1xi32>
      %36 = arith.cmpi sge, %19, %35 : vector<64x1xi32>
      %37 = vector.broadcast %34 : i32 to vector<64x1xi32>
      %38 = arith.cmpi slt, %19, %37 : vector<64x1xi32>
      %39 = arith.andi %36, %38 : vector<64x1xi1>
      %cst_13 = arith.constant 0xFF800000 : f32
      %40 = vector.shape_cast %39 : vector<64x1xi1> to vector<64x1xi1>
      %41 = vector.broadcast %40 : vector<64x1xi1> to vector<64x128xi1>
      %42 = vector.broadcast %cst_13 : f32 to vector<64x128xf32>
      %43 = arith.select %41, %15, %42 : vector<64x128xi1>, vector<64x128xf32>
      %cst_14 = arith.constant dense<0xFF800000> : vector<128xf32>
      %44 = vector.multi_reduction <maximumf>, %43, %cst_14 [0] : vector<64x128xf32> to vector<128xf32>
      %45 = vector.shape_cast %44 : vector<128xf32> to vector<1x128xf32>
      %c0_15 = arith.constant 0 : index
      %46 = arith.index_cast %21 : i32 to index
      %c0_16 = arith.constant 0 : index
      %47 = vector.load %arg9[%c0_15, %46, %c0_16] : memref<1x8x128xf32, #tpu.memory_space<vmem>>, vector<1x1x128xf32>
      %48 = vector.shape_cast %47 : vector<1x1x128xf32> to vector<1x128xf32>
      %49 = arith.maximumf %48, %45 : vector<1x128xf32>
      %c0_17 = arith.constant 0 : index
      %50 = arith.index_cast %21 : i32 to index
      %c0_18 = arith.constant 0 : index
      %51 = vector.load %arg9[%c0_17, %50, %c0_18] : memref<1x8x128xf32, #tpu.memory_space<vmem>>, vector<1x1x128xf32>
      %52 = vector.shape_cast %51 : vector<1x1x128xf32> to vector<1x128xf32>
      %53 = vector.shape_cast %49 : vector<1x128xf32> to vector<1x1x128xf32>
      tpu.vector_store %arg9[%c0_17, %50, %c0_18], %53 {strides = array<i32>} : memref<1x8x128xf32, #tpu.memory_space<vmem>>, vector<1x1x128xf32>,
    } else {
    }
    %27 = arith.cmpi slt, %21, %23 : i32
    %28 = arith.extui %27 : i1 to i32
    %c0_i32_11 = arith.constant 0 : i32
    %29 = arith.cmpi ne, %28, %c0_i32_11 : i32
    scf.if %29 {
      %c1_i32_12 = arith.constant 1 : i32
      %30 = arith.addi %23, %c1_i32_12 : i32
      %c0_i32_13 = arith.constant 0 : i32
      %31 = arith.subi %30, %21 : i32
      %32 = arith.addi %21, %31 : i32
      %c1_i32_14 = arith.constant 1 : i32
      scf.for %arg10 = %21 to %32 step %c1_i32_14  : i32 {
        %33 = arith.index_cast %arg10 : i32 to index
        %34 = memref.load %arg2[%33] : memref<3xi32, #tpu.memory_space<smem>>
        %c1_i32_15 = arith.constant 1 : i32
        %35 = arith.addi %arg10, %c1_i32_15 : i32
        %36 = arith.index_cast %35 : i32 to index
        %37 = memref.load %arg2[%36] : memref<3xi32, #tpu.memory_space<smem>>
        %38 = vector.broadcast %34 : i32 to vector<64x1xi32>
        %39 = arith.cmpi sge, %19, %38 : vector<64x1xi32>
        %40 = vector.broadcast %37 : i32 to vector<64x1xi32>
        %41 = arith.cmpi slt, %19, %40 : vector<64x1xi32>
        %42 = arith.andi %39, %41 : vector<64x1xi1>
        %cst_16 = arith.constant 0xFF800000 : f32
        %43 = vector.shape_cast %42 : vector<64x1xi1> to vector<64x1xi1>
        %44 = vector.broadcast %43 : vector<64x1xi1> to vector<64x128xi1>
        %45 = vector.broadcast %cst_16 : f32 to vector<64x128xf32>
        %46 = arith.select %44, %15, %45 : vector<64x128xi1>, vector<64x128xf32>
        %cst_17 = arith.constant dense<0xFF800000> : vector<128xf32>
        %47 = vector.multi_reduction <maximumf>, %46, %cst_17 [0] : vector<64x128xf32> to vector<128xf32>
        %48 = vector.shape_cast %47 : vector<128xf32> to vector<1x128xf32>
        %c0_18 = arith.constant 0 : index
        %49 = arith.index_cast %arg10 : i32 to index
        %c0_19 = arith.constant 0 : index
        %50 = vector.load %arg9[%c0_18, %49, %c0_19] : memref<1x8x128xf32, #tpu.memory_space<vmem>>, vector<1x1x128xf32>
        %51 = vector.shape_cast %50 : vector<1x1x128xf32> to vector<1x128xf32>
        %52 = arith.maximumf %51, %48 : vector<1x128xf32>
        %c0_20 = arith.constant 0 : index
        %53 = arith.index_cast %arg10 : i32 to index
        %c0_21 = arith.constant 0 : index
        %54 = vector.load %arg9[%c0_20, %53, %c0_21] : memref<1x8x128xf32, #tpu.memory_space<vmem>>, vector<1x1x128xf32>
        %55 = vector.shape_cast %54 : vector<1x1x128xf32> to vector<1x128xf32>
        %56 = vector.shape_cast %52 : vector<1x128xf32> to vector<1x1x128xf32>
        tpu.vector_store %arg9[%c0_20, %53, %c0_21], %56 {strides = array<i32>} : memref<1x8x128xf32, #tpu.memory_space<vmem>>, vector<1x1x128xf32>,
      }
    } else {
    }
    return
  }
  func.func @transform_0(%arg0: i32, %arg1: i32, %arg2: memref<3xi32, #tpu.memory_space<smem>>, %arg3: memref<2xi32, #tpu.memory_space<smem>>, %arg4: memref<2xi32, #tpu.memory_space<smem>>) -> (i32, i32) {
    %c1_i32 = arith.constant 1 : i32
    %0 = arith.muli %arg0, %c1_i32 : i32
    %1 = arith.addi %0, %arg1 : i32
    %c0_i32 = arith.constant 0 : i32
    %c0_i32_0 = arith.constant 0 : i32
    return %1, %c0_i32 : i32, i32
  }
  func.func @transform_1(%arg0: i32, %arg1: i32, %arg2: memref<3xi32, #tpu.memory_space<smem>>, %arg3: memref<2xi32, #tpu.memory_space<smem>>, %arg4: memref<2xi32, #tpu.memory_space<smem>>) -> (i32, i32) {
    %c0_i32 = arith.constant 0 : i32
    %c0_i32_0 = arith.constant 0 : i32
    %c0_i32_1 = arith.constant 0 : i32
    return %c0_i32, %c0_i32_0 : i32, i32
  }
  func.func @transform_2(%arg0: i32, %arg1: i32, %arg2: memref<3xi32, #tpu.memory_space<smem>>, %arg3: memref<2xi32, #tpu.memory_space<smem>>, %arg4: memref<2xi32, #tpu.memory_space<smem>>) -> (i32, i32) {
    %c0_i32 = arith.constant 0 : i32
    %c0_i32_0 = arith.constant 0 : i32
    %c0_i32_1 = arith.constant 0 : i32
    return %c0_i32, %c0_i32_0 : i32, i32
  }
  func.func @transform_3(%arg0: i32, %arg1: i32, %arg2: memref<3xi32, #tpu.memory_space<smem>>, %arg3: memref<2xi32, #tpu.memory_space<smem>>, %arg4: memref<2xi32, #tpu.memory_space<smem>>) -> (i32, i32) {
    %c0_i32 = arith.constant 0 : i32
    %c0_i32_0 = arith.constant 0 : i32
    %c0_i32_1 = arith.constant 0 : i32
    return %c0_i32, %c0_i32_0 : i32, i32
  }
  func.func @transform_4(%arg0: i32, %arg1: i32, %arg2: memref<3xi32, #tpu.memory_space<smem>>, %arg3: memref<2xi32, #tpu.memory_space<smem>>, %arg4: memref<2xi32, #tpu.memory_space<smem>>) -> (i32, i32, i32) {
    %c0_i32 = arith.constant 0 : i32
    %c0_i32_0 = arith.constant 0 : i32
    %c0_i32_1 = arith.constant 0 : i32
    return %arg0, %c0_i32, %c0_i32_0 : i32, i32, i32
  }
}

</mosaic_0001>

<llo_original>
// kernel: tpu_custom_call.1
$region0: #{tpu_custom_call.1}
  #allocation0 [shape = 'u32[]', space=smem, size = 0x4, offset = 0x4, fixed_abs, tag = 'smem constant byte address 0x4 - core index']
  #allocation1 [shape = 'u32[72,128]{1,0:T(1,128)}', space=vmem, size = 0x9000, scoped, tag = 'internal scratch']
  #allocation2 [shape = 's32[1]{0}', space=sflag, size = 0x4, scoped, tag = 'scoped memory for tpu_custom_call.1']
  #allocation3 [shape = 'u8[512]{0}', space=smem, size = 0x200, scoped, tag = 'prefetched SMEM operand 0']
  #allocation4 [shape = 'u8[512]{0}', space=smem, size = 0x200, scoped, tag = 'prefetched SMEM operand 1']
  #allocation5 [shape = 'u8[512]{0}', space=smem, size = 0x200, scoped, tag = 'prefetched SMEM operand 2']
  %s0 = inlined_call_operand.vmem [shape: s32[3], index: 0, kind: input, shape index: {}]
  %s1 = inlined_call_operand.vmem [shape: s32[2], index: 1, kind: input, shape index: {}]
  %s2 = inlined_call_operand.vmem [shape: s32[2], index: 2, kind: input, shape index: {}]
  %s3 = inlined_call_operand.vmem [shape: bf16[128,8], index: 3, kind: input, shape index: {}]
  %s4 = inlined_call_operand.vmem [shape: bf16[8,128], index: 4, kind: input, shape index: {}]
  %s5 = inlined_call_operand.vmem [shape: f32[1,128], index: 5, kind: input, shape index: {}]
  %s6 = inlined_call_operand.vmem [shape: bf16[128,128], index: 6, kind: input, shape index: {}]
  %s7 = inlined_call_operand.hbm [shape: f32[2,8,128], index: 7, kind: output, shape index: {}]
  %s8 = sld [smem:[#allocation0]]
  $region68: #{tpu_custom_call.1} parent=0
    _
  %s10 = ssub.s32 1, %s8
  %s11 = scalar_select 0, %s10, %s8
  %s13 = sshll.u32 %s0, 4
  %s14 = int_to_ptr.vmem [resolvable:$true] %s13
  %16 = dma.vmem_to_smem %s14, 16, [#allocation3], [#allocation2]
  %s18 = sshll.u32 %s1, 4
  %s19 = int_to_ptr.vmem [resolvable:$true] %s18
  %21 = dma.vmem_to_smem %s19, 16, [#allocation4], [#allocation2]
  %s23 = sshll.u32 %s2, 4
  %s24 = int_to_ptr.vmem [resolvable:$true] %s23
  %26 = dma.vmem_to_smem %s24, 16, [#allocation5], [#allocation2]
  %28 = dma.done [#allocation2], 48
  %29 = sfence
  $region1: #{tpu_custom_call.1} parent=0
    #allocation6 [shape = 'u8[8192]{0}', space=vmem, size = 0x2000, scoped, tag = 'output window, operand 0']
    #allocation7 [shape = 's32[2]{0}', space=sflag, size = 0x8, scoped, tag = 'scoped memory for tpu_custom_call.1']
    %30 = vsyncpa [#allocation7], 0
    %s31 = scalar_lea.sflag [#allocation7], 1
    %32 = vsyncpa %s31, 0
    loop: start=0, step=1, limit=4
    $region2: #{tpu_custom_call.1} parent=1 // loop_pre_header
      _
    $region3: #{tpu_custom_call.1} parent=1 // loop_header
      %s34 = sphi 0, %s38
      %p35 = scmp.ge.s32.totalorder %s34, 4
      %s41 = sphi 0, %s53
      %s42 = sphi 0, %s49
      %s43 = sphi 0, %s41
      %s44 = sphi 0, %s42
      %s45 = sphi 0, %s43
      %s46 = sphi 0, %s44
      %s58 = sphi 0, %s60
      %s61 = sphi 0, %s58
      %s62 = sphi 0, %s61
      %s78 = sphi 0, %s62
      %s82 = sphi 0, %s82
      %s84 = sphi 0, %s82
      %s85 = sphi 0, %s84
      %s99 = sphi 0, %s85
      %s103 = sphi 0, %s103
      %s105 = sphi 0, %s103
      %s106 = sphi 0, %s105
      %s120 = sphi 0, %s106
      %s124 = sphi 0, %s124
      %s126 = sphi 0, %s124
      %s127 = sphi 0, %s126
      %s141 = sphi 0, %s127
      %s147 = sphi 0, %s149
      %s150 = sphi 0, %s147
      %s151 = sphi 0, %s150
      %s167 = sphi 0, %s151
    $region4: #{tpu_custom_call.1} parent=1 // loop_header_branch
      %37 = sbr.rel (%p35) target = $region8
    $region5: #{tpu_custom_call.1} parent=1 // loop_body
      %s39 = ssub.s32 %s34, 1
      %s40 = ssub.s32 %s34, 2
      %s47 = sadd.s32 1, %s42
      %p48 = scmp.ge.s32.totalorder %s47, 1
      %s49 = scalar_select %p48, 0, %s47
      %s50 = sadd.s32 1, %s41
      %s51 = scalar_select %p48, %s50, %s41
      %p52 = scmp.ge.s32.totalorder %s51, 2
      %s53 = scalar_select %p52, 0, %s51
      %s54 = sadd.s32 %s41, %s42
      %s55 = sadd.s32 %s53, %s49
      %s56 = ssub.s32 %s54, %s55
      %p57 = scmp.eq.s32.totalorder %s56, 0
      %s59 = sadd.s32 %s58, 1
      %s60 = scalar_select %p57, %s58, %s59
      %p63 = pneg %p57
      %p64 = scmp.eq.s32.totalorder %s34, 1
      %p65 = por %p63, %p64
      %p66 = scmp.ne.s32.totalorder %s58, %s61
      %p67 = scmp.eq.s32.totalorder %s34, 0
      %p68 = por %p66, %p67
      %p69 = scmp.ne.s32.totalorder %s58, %s61
      %p70 = scmp.eq.s32.totalorder %s39, 1
      %p71 = por %p69, %p70
      %p72 = scmp.ne.s32.totalorder %s61, %s62
      %p73 = scmp.eq.s32.totalorder %s39, 0
      %p74 = por %p72, %p73
      %p75 = scmp.ne.s32.totalorder %s61, %s62
      %p76 = scmp.eq.s32.totalorder %s40, 1
      %p77 = por %p75, %p76
      %p79 = scmp.ne.s32.totalorder %s62, %s78
      %p80 = scmp.eq.s32.totalorder %s40, 0
      %p81 = por %p79, %p80
      %s83 = sadd.s32 %s82, 1
      %p86 = scmp.eq.s32.totalorder %s34, 1
      %p87 = scmp.ne.s32.totalorder %s82, %s84
      %p88 = scmp.eq.s32.totalorder %s34, 0
      %p89 = por %p87, %p88
      %p90 = scmp.ne.s32.totalorder %s82, %s84
      %p91 = scmp.eq.s32.totalorder %s39, 1
      %p92 = por %p90, %p91
      %p93 = scmp.ne.s32.totalorder %s84, %s85
      %p94 = scmp.eq.s32.totalorder %s39, 0
      %p95 = por %p93, %p94
      %p96 = scmp.ne.s32.totalorder %s84, %s85
      %p97 = scmp.eq.s32.totalorder %s40, 1
      %p98 = por %p96, %p97
      %p100 = scmp.ne.s32.totalorder %s85, %s99
      %p101 = scmp.eq.s32.totalorder %s40, 0
      %p102 = por %p100, %p101
      %s104 = sadd.s32 %s103, 1
      %p107 = scmp.eq.s32.totalorder %s34, 1
      %p108 = scmp.ne.s32.totalorder %s103, %s105
      %p109 = scmp.eq.s32.totalorder %s34, 0
      %p110 = por %p108, %p109
      %p111 = scmp.ne.s32.totalorder %s103, %s105
      %p112 = scmp.eq.s32.totalorder %s39, 1
      %p113 = por %p111, %p112
      %p114 = scmp.ne.s32.totalorder %s105, %s106
      %p115 = scmp.eq.s32.totalorder %s39, 0
      %p116 = por %p114, %p115
      %p117 = scmp.ne.s32.totalorder %s105, %s106
      %p118 = scmp.eq.s32.totalorder %s40, 1
      %p119 = por %p117, %p118
      %p121 = scmp.ne.s32.totalorder %s106, %s120
      %p122 = scmp.eq.s32.totalorder %s40, 0
      %p123 = por %p121, %p122
      %s125 = sadd.s32 %s124, 1
      %p128 = scmp.eq.s32.totalorder %s34, 1
      %p129 = scmp.ne.s32.totalorder %s124, %s126
      %p130 = scmp.eq.s32.totalorder %s34, 0
      %p131 = por %p129, %p130
      %p132 = scmp.ne.s32.totalorder %s124, %s126
      %p133 = scmp.eq.s32.totalorder %s39, 1
      %p134 = por %p132, %p133
      %p135 = scmp.ne.s32.totalorder %s126, %s127
      %p136 = scmp.eq.s32.totalorder %s39, 0
      %p137 = por %p135, %p136
      %p138 = scmp.ne.s32.totalorder %s126, %s127
      %p139 = scmp.eq.s32.totalorder %s40, 1
      %p140 = por %p138, %p139
      %p142 = scmp.ne.s32.totalorder %s127, %s141
      %p143 = scmp.eq.s32.totalorder %s40, 0
      %p144 = por %p142, %p143
      %s145 = ssub.s32 %s41, %s53
      %p146 = scmp.eq.s32.totalorder %s145, 0
      %s148 = sadd.s32 %s147, 1
      %s149 = scalar_select %p146, %s147, %s148
      %p152 = pneg %p146
      %p153 = scmp.eq.s32.totalorder %s34, 1
      %p154 = por %p152, %p153
      %p155 = scmp.ne.s32.totalorder %s147, %s150
      %p156 = scmp.eq.s32.totalorder %s34, 0
      %p157 = por %p155, %p156
      %p158 = scmp.ne.s32.totalorder %s147, %s150
      %p159 = scmp.eq.s32.totalorder %s39, 1
      %p160 = por %p158, %p159
      %p161 = scmp.ne.s32.totalorder %s150, %s151
      %p162 = scmp.eq.s32.totalorder %s39, 0
      %p163 = por %p161, %p162
      %p164 = scmp.ne.s32.totalorder %s150, %s151
      %p165 = scmp.eq.s32.totalorder %s40, 1
      %p166 = por %p164, %p165
      %p168 = scmp.ne.s32.totalorder %s151, %s167
      %p169 = scmp.eq.s32.totalorder %s40, 0
      %p170 = por %p168, %p169
      %p171 = scmp.le.s32.totalorder 1, %s34
      %p172 = scmp.lt.s32.totalorder %s34, 3
      %p173 = pnand %p171, %p172
      %p174 = pneg %p173
      // Predicated region
      $region9: #{tpu_custom_call.1} parent=5 // pred_check
        _
      $region10: #{tpu_custom_call.1} parent=5 // pred_check_branch
        %176 = sbr.rel (%p173) target = $region12
      $region11: #{tpu_custom_call.1} parent=5 // pred_region
        %s177 = ssub.s32 %s34, 1
        // Predicated region
        $region13: #{tpu_custom_call.1} parent=11 // pred_check
          %p178 = pneg %p95
        $region14: #{tpu_custom_call.1} parent=11 // pred_check_branch
          %180 = sbr.rel (%p178) target = $region16
        $region15: #{tpu_custom_call.1} parent=11 // pred_region
          _
        $region16: #{tpu_custom_call.1} parent=11 // pred_fallthru
          _
        // Predicated region
        $region17: #{tpu_custom_call.1} parent=11 // pred_check
          %p181 = pneg %p116
        $region18: #{tpu_custom_call.1} parent=11 // pred_check_branch
          %183 = sbr.rel (%p181) target = $region20
        $region19: #{tpu_custom_call.1} parent=11 // pred_region
          _
        $region20: #{tpu_custom_call.1} parent=11 // pred_fallthru
          _
        // Predicated region
        $region21: #{tpu_custom_call.1} parent=11 // pred_check
          %p184 = pneg %p137
        $region22: #{tpu_custom_call.1} parent=11 // pred_check_branch
          %186 = sbr.rel (%p184) target = $region24
        $region23: #{tpu_custom_call.1} parent=11 // pred_region
          _
        $region24: #{tpu_custom_call.1} parent=11 // pred_fallthru
          _
      $region12: #{tpu_custom_call.1} parent=5 // pred_fallthru
        _
      %p187 = scmp.lt.s32.totalorder %s34, 2
      // Predicated region
      $region25: #{tpu_custom_call.1} parent=5 // pred_check
        %p188 = pneg %p187
      $region26: #{tpu_custom_call.1} parent=5 // pred_check_branch
        %190 = sbr.rel (%p188) target = $region28
      $region27: #{tpu_custom_call.1} parent=5 // pred_region
        // Predicated region
        $region29: #{tpu_custom_call.1} parent=27 // pred_check
          %p191 = pneg %p68
        $region30: #{tpu_custom_call.1} parent=27 // pred_check_branch
          %193 = sbr.rel (%p191) target = $region32
        $region31: #{tpu_custom_call.1} parent=27 // pred_region
          %s194 = sadd.s32 %s41, %s42
          %s195 = smul.u32 8, %s194
          %p196 = scmp.lt.s32.totalorder %s195, 15
          %s197 = scalar_select %p196, %s195, 15
          %s198 = smul.addr %s197, 4
          %s199 = scalar_lea.vmem %s3, %s198
          %s200 = sadd.s32 %s41, %s42
          %s201 = smul.u32 8, %s200
        $region32: #{tpu_custom_call.1} parent=27 // pred_fallthru
          _
      $region28: #{tpu_custom_call.1} parent=5 // pred_fallthru
        _
      %p202 = scmp.le.s32.totalorder 1, %s34
      %p203 = scmp.lt.s32.totalorder %s34, 3
      %p204 = pnand %p202, %p203
      %p205 = pneg %p204
      // Predicated region
      $region33: #{tpu_custom_call.1} parent=5 // pred_check
        _
      $region34: #{tpu_custom_call.1} parent=5 // pred_check_branch
        %207 = sbr.rel (%p204) target = $region36
      $region35: #{tpu_custom_call.1} parent=5 // pred_region
        %s208 = ssub.s32 %s34, 1
        %s209 = sadd.s32 %s43, %s44
        %s210 = smul.u32 8, %s209
        %p211 = scmp.lt.s32.totalorder %s210, 15
        %s212 = scalar_select %p211, %s210, 15
        %s213 = smul.addr %s212, 4
        %s214 = scalar_lea.vmem %s3, %s213
        %p215 = pneg %p74
        %p216 = pneg %p71
        %p217 = pneg %p95
        %p218 = pneg %p92
        %p219 = pneg %p116
        %p220 = pneg %p113
        %p221 = pneg %p137
        %p222 = pneg %p134
        %p223 = pneg %p163
        %p224 = pneg %p160
        %s225 = sand.u32 %s150, 1
        %s226 = scalar_lea.sflag [#allocation7], %s225
        %s227 = sand.u32 %s150, 1
        %s228 = smul.addr %s227, 8
        %s229 = scalar_lea.vmem [#allocation6], %s228
        %s230 = sadd.s32 %s43, %s44
        %s231 = smul.u32 8, %s230
        %p232 = scmp.lt.s32.totalorder %s231, 15
        %s233 = scalar_select %p232, %s231, 15
        %s234 = smul.addr %s233, 4
        %s235 = scalar_lea.vmem %s3, %s234
        %s236 = sadd.s32 %s43, %s44
        %s237 = smul.u32 8, %s236
        %s239 = sadd.s32 %s43, %s44
        %p240 = scmp.eq.s32.totalorder %s44, 0
        // Predicated region
        $region37: #{tpu_custom_call.1} parent=35 // pred_check
          %p241 = pneg %p240
        $region38: #{tpu_custom_call.1} parent=35 // pred_check_branch
          %243 = sbr.rel (%p241) target = $region40
        $region39: #{tpu_custom_call.1} parent=35 // pred_region
          %244 = vst [vmem:[%s229] sm:$0xff] -inf
        $region40: #{tpu_custom_call.1} parent=35 // pred_fallthru
          _
        %v245 = vld [vmem:[%s235] sm:$0xf]
        %v246 = vld [vmem:[%s235 + $0x4] sm:$0xf]
        %v247 = vld [vmem:[%s235 + $0x8] sm:$0xf]
        %v248 = vld [vmem:[%s235 + $0xc] sm:$0xf]
        %v249 = vld [vmem:[%s235 + $0x10] sm:$0xf]
        %v250 = vld [vmem:[%s235 + $0x14] sm:$0xf]
        %v251 = vld [vmem:[%s235 + $0x18] sm:$0xf]
        %v252 = vld [vmem:[%s235 + $0x1c] sm:$0xf]
        %v253 = vld [vmem:[%s4] sm:$0xf]
        %v254 = vld [vmem:[%s5] sm:$0x1]
        %v256 = vperm.slane %v254, 0
        %v266 = vunpack.c.l.b16 %v245
        %v267 = vunpack.c.l.b16 %v246
        %v268 = vunpack.c.l.b16 %v247
        %v269 = vunpack.c.l.b16 %v248
        %v270 = vunpack.c.l.b16 %v249
        %v271 = vunpack.c.l.b16 %v250
        %v272 = vunpack.c.l.b16 %v251
        %v273 = vunpack.c.l.b16 %v252
        %v274 = vpack.c.b16 %v267, %v266
        %v275 = vpack.c.b16 %v269, %v268
        %v276 = vpack.c.b16 %v271, %v270
        %v277 = vpack.c.b16 %v273, %v272
        %vm278 = vcmask 64512
        %v280 = vsel %vm278, %v274, 0
        %v283 = vsel %vm278, %v275, 0
        %v286 = vsel %vm278, %v276, 0
        %v289 = vsel %vm278, %v277, 0
        %vm291 = vcmask 1043456
        %v293 = vsel %vm291, %v253, 0
        %295 = vmatpush.bf16.msra.mxu0 0
        %296 = vmatpush.bf16.msra.mxu0 0
        %297 = vmatpush.bf16.msra.mxu0 0
        %298 = vmatpush.bf16.msra.mxu0 0
        %299 = vmatpush.bf16.msra.mxu0 0
        %300 = vmatpush.bf16.msra.mxu0 0
        %301 = vmatpush.bf16.msra.mxu0 0
        %302 = vmatpush.bf16.msra.mxu0 %v293
        %303 = vmatmul.bf16.gmra.mxu0 %v280
        %v304 = vpop.f32.mrf.mxu0
        %v305 = vadd.f32 %v256, %v304
        %v306 = vpop.f32.mrf.mxu0
        %v307 = vadd.f32 %v256, %v306
        %308 = vmatmul.bf16.gmra.mxu0 %v283
        %v309 = vpop.f32.mrf.mxu0
        %v310 = vadd.f32 %v256, %v309
        %v311 = vpop.f32.mrf.mxu0
        %v312 = vadd.f32 %v256, %v311
        %313 = vmatmul.bf16.gmra.mxu0 %v286
        %v314 = vpop.f32.mrf.mxu0
        %v315 = vadd.f32 %v256, %v314
        %v316 = vpop.f32.mrf.mxu0
        %v317 = vadd.f32 %v256, %v316
        %318 = vmatmul.bf16.gmra.mxu0 %v289
        %v319 = vpop.f32.mrf.mxu0
        %v320 = vadd.f32 %v256, %v319
        %v321 = vpop.f32.mrf.mxu0
        %v322 = vadd.f32 %v256, %v321
        %323 = vdwg.mxu0
        %v324 = vmax.f32 %v305, 0.0
        %v325 = vmax.f32 %v307, 0.0
        %v326 = vmax.f32 %v310, 0.0
        %v327 = vmax.f32 %v312, 0.0
        %v328 = vmax.f32 %v315, 0.0
        %v329 = vmax.f32 %v317, 0.0
        %v330 = vmax.f32 %v320, 0.0
        %v331 = vmax.f32 %v322, 0.0
        %v332 = vpack.c.bf16 %v325, %v324
        %v333 = vpack.c.bf16 %v327, %v326
        %v334 = vpack.c.bf16 %v329, %v328
        %v335 = vpack.c.bf16 %v331, %v330
        %v336 = vld [vmem:[%s6] sm:$0xf]
        %v337 = vld [vmem:[%s6 + $0x4] sm:$0xf]
        %v338 = vld [vmem:[%s6 + $0x8] sm:$0xf]
        %v339 = vld [vmem:[%s6 + $0xc] sm:$0xf]
        %v340 = vld [vmem:[%s6 + $0x10] sm:$0xf]
        %v341 = vld [vmem:[%s6 + $0x14] sm:$0xf]
        %v342 = vld [vmem:[%s6 + $0x18] sm:$0xf]
        %v343 = vld [vmem:[%s6 + $0x1c] sm:$0xf]
        %v344 = vld [vmem:[%s6 + $0x20] sm:$0xf]
        %v345 = vld [vmem:[%s6 + $0x24] sm:$0xf]
        %v346 = vld [vmem:[%s6 + $0x28] sm:$0xf]
        %v347 = vld [vmem:[%s6 + $0x2c] sm:$0xf]
        %v348 = vld [vmem:[%s6 + $0x30] sm:$0xf]
        %v349 = vld [vmem:[%s6 + $0x34] sm:$0xf]
        %v350 = vld [vmem:[%s6 + $0x38] sm:$0xf]
        %v351 = vld [vmem:[%s6 + $0x3c] sm:$0xf]
        %v368 = vunpack.c.l.b16 %v336
        %v369 = vunpack.c.l.b16 %v337
        %v370 = vunpack.c.l.b16 %v338
        %v371 = vunpack.c.l.b16 %v339
        %v372 = vunpack.c.l.b16 %v340
        %v373 = vunpack.c.l.b16 %v341
        %v374 = vunpack.c.l.b16 %v342
        %v375 = vunpack.c.l.b16 %v343
        %v376 = vunpack.c.l.b16 %v344
        %v377 = vunpack.c.l.b16 %v345
        %v378 = vunpack.c.l.b16 %v346
        %v379 = vunpack.c.l.b16 %v347
        %v380 = vunpack.c.l.b16 %v348
        %v381 = vunpack.c.l.b16 %v349
        %v382 = vunpack.c.l.b16 %v350
        %v383 = vunpack.c.l.b16 %v351
        %v384 = vpack.c.b16 %v369, %v368
        %v385 = vpack.c.b16 %v371, %v370
        %v386 = vpack.c.b16 %v373, %v372
        %v387 = vpack.c.b16 %v375, %v374
        %v388 = vpack.c.b16 %v377, %v376
        %v389 = vpack.c.b16 %v379, %v378
        %v390 = vpack.c.b16 %v381, %v380
        %v391 = vpack.c.b16 %v383, %v382
        %400 = vmatpush.bf16.msra.mxu0 %v391
        %401 = vmatpush.bf16.msra.mxu0 %v390
        %402 = vmatpush.bf16.msra.mxu0 %v389
        %403 = vmatpush.bf16.msra.mxu0 %v388
        %404 = vmatpush.bf16.msra.mxu0 %v387
        %405 = vmatpush.bf16.msra.mxu0 %v386
        %406 = vmatpush.bf16.msra.mxu0 %v385
        %407 = vmatpush.bf16.msra.mxu0 %v384
        %408 = vmatmul.bf16.gmra.mxu0 %v332
        %v409 = vpop.f32.mrf.mxu0
        %v410 = vadd.f32 0.0, %v409
        %v411 = vpop.f32.mrf.mxu0
        %v412 = vadd.f32 0.0, %v411
        %413 = vmatmul.bf16.gmra.mxu0 %v333
        %v414 = vpop.f32.mrf.mxu0
        %v415 = vadd.f32 0.0, %v414
        %v416 = vpop.f32.mrf.mxu0
        %v417 = vadd.f32 0.0, %v416
        %418 = vmatmul.bf16.gmra.mxu0 %v334
        %v419 = vpop.f32.mrf.mxu0
        %v420 = vadd.f32 0.0, %v419
        %v421 = vpop.f32.mrf.mxu0
        %v422 = vadd.f32 0.0, %v421
        %423 = vmatmul.bf16.gmra.mxu0 %v335
        %v424 = vpop.f32.mrf.mxu0
        %v425 = vadd.f32 0.0, %v424
        %v426 = vpop.f32.mrf.mxu0
        %v427 = vadd.f32 0.0, %v426
        %428 = vdwg.mxu0
        %v429 = vlaneseq
        %v430 = vshrl.u32 %v429, 7
        %v431 = vadd.s32 %v430, 8
        %v432 = vadd.s32 %v430, 16
        %v433 = vadd.s32 %v430, 24
        %v434 = vadd.s32 %v430, 32
        %v435 = vadd.s32 %v430, 40
        %v436 = vadd.s32 %v430, 48
        %v437 = vadd.s32 %v430, 56
        %s438 = smul.u32 %s239, 64
        %v439 = vstv %s438
        %v440 = vadd.s32 %v430, %v439
        %v441 = vadd.s32 %v431, %v439
        %v442 = vadd.s32 %v432, %v439
        %v443 = vadd.s32 %v433, %v439
        %v444 = vadd.s32 %v434, %v439
        %v445 = vadd.s32 %v435, %v439
        %v446 = vadd.s32 %v436, %v439
        %v447 = vadd.s32 %v437, %v439
        %s448 = sld [smem:[#allocation4 + %s239]]
        %s449 = sld [smem:[#allocation5 + %s239]]
        %p450 = scmp.eq.s32.totalorder %s448, %s449
        // Predicated region
        $region41: #{tpu_custom_call.1} parent=35 // pred_check
          %p451 = pneg %p450
        $region42: #{tpu_custom_call.1} parent=35 // pred_check_branch
          %453 = sbr.rel (%p451) target = $region44
        $region43: #{tpu_custom_call.1} parent=35 // pred_region
          %s454 = sld [smem:[#allocation3 + %s448]]
          %s455 = sadd.s32 %s448, 1
          %s456 = sld [smem:[#allocation3 + %s455]]
          %v457 = vstv %s454
          %vm458 = vcmp.ge.s32.totalorder %v440, %v457
          %vm459 = vcmp.ge.s32.totalorder %v441, %v457
          %vm460 = vcmp.ge.s32.totalorder %v442, %v457
          %vm461 = vcmp.ge.s32.totalorder %v443, %v457
          %vm462 = vcmp.ge.s32.totalorder %v444, %v457
          %vm463 = vcmp.ge.s32.totalorder %v445, %v457
          %vm464 = vcmp.ge.s32.totalorder %v446, %v457
          %vm465 = vcmp.ge.s32.totalorder %v447, %v457
          %v466 = vstv %s456
          %vm467 = vcmp.lt.s32.totalorder %v440, %v466
          %vm468 = vcmp.lt.s32.totalorder %v441, %v466
          %vm469 = vcmp.lt.s32.totalorder %v442, %v466
          %vm470 = vcmp.lt.s32.totalorder %v443, %v466
          %vm471 = vcmp.lt.s32.totalorder %v444, %v466
          %vm472 = vcmp.lt.s32.totalorder %v445, %v466
          %vm473 = vcmp.lt.s32.totalorder %v446, %v466
          %vm474 = vcmp.lt.s32.totalorder %v447, %v466
          %vm475 = vmand %vm458, %vm467
          %vm476 = vmand %vm459, %vm468
          %vm477 = vmand %vm460, %vm469
          %vm478 = vmand %vm461, %vm470
          %vm479 = vmand %vm462, %vm471
          %vm480 = vmand %vm463, %vm472
          %vm481 = vmand %vm464, %vm473
          %vm482 = vmand %vm465, %vm474
          %v483 = vsel %vm475, 1, 0
          %v484 = vsel %vm476, 1, 0
          %v485 = vsel %vm477, 1, 0
          %v486 = vsel %vm478, 1, 0
          %v487 = vsel %vm479, 1, 0
          %v488 = vsel %vm480, 1, 0
          %v489 = vsel %vm481, 1, 0
          %v490 = vsel %vm482, 1, 0
          %vm491 = vcmp.eq.s32.totalorder %v483, 1
          %vm492 = vcmp.eq.s32.totalorder %v484, 1
          %vm493 = vcmp.eq.s32.totalorder %v485, 1
          %vm494 = vcmp.eq.s32.totalorder %v486, 1
          %vm495 = vcmp.eq.s32.totalorder %v487, 1
          %vm496 = vcmp.eq.s32.totalorder %v488, 1
          %vm497 = vcmp.eq.s32.totalorder %v489, 1
          %vm498 = vcmp.eq.s32.totalorder %v490, 1
          %v499 = vsel %vm491, %v410, -inf
          %v500 = vsel %vm492, %v412, -inf
          %v501 = vsel %vm493, %v415, -inf
          %v502 = vsel %vm494, %v417, -inf
          %v503 = vsel %vm495, %v420, -inf
          %v504 = vsel %vm496, %v422, -inf
          %v505 = vsel %vm497, %v425, -inf
          %v506 = vsel %vm498, %v427, -inf
          %v507 = vmax.f32 %v499, %v503
          %v508 = vmax.f32 %v500, %v504
          %v509 = vmax.f32 %v501, %v505
          %v510 = vmax.f32 %v502, %v506
          %v511 = vmax.f32 %v507, %v508
          %v512 = vmax.f32 %v509, %v510
          %v513 = vmax.f32 %v511, %v512
          %v514 = vrot.slane %v513, 4
          %v515 = vmax.f32 %v513, %v514
          %v516 = vrot.slane %v515, 2
          %v517 = vmax.f32 %v515, %v516
          %v518 = vrot.slane %v517, 1
          %v519 = vmax.f32 %v517, %v518
          %s520 = scalar_lea.vmem %s229, %s448 [#allocation6]
          %v521 = vld [vmem:[%s520] sm:$0x1]
          %v522 = vmax.f32 %v521, %v519
          %523 = vst [vmem:[%s520] sm:$0x1] %v522
        $region44: #{tpu_custom_call.1} parent=35 // pred_fallthru
          _
        %p524 = scmp.lt.s32.totalorder %s448, %s449
        // Predicated region
        $region45: #{tpu_custom_call.1} parent=35 // pred_check
          %p525 = pneg %p524
        $region46: #{tpu_custom_call.1} parent=35 // pred_check_branch
          %527 = sbr.rel (%p525) target = $region48
        $region47: #{tpu_custom_call.1} parent=35 // pred_region
          %s528 = sadd.s32 %s449, 1
          // While loop
          $region49: #{tpu_custom_call.1} parent=47 // loop_pre_header
            _
          $region50: #{tpu_custom_call.1} parent=47 // loop_header
            %s530 = sphi %s448, %s532
            %p531 = scmp.ge.s32.totalorder %s530, %s528
          $region51: #{tpu_custom_call.1} parent=47 // loop_header_branch
            %534 = sbr.rel (%p531) target = $region55
          $region52: #{tpu_custom_call.1} parent=47 // loop_body
            %s535 = sld [smem:[#allocation3 + %s530]]
            %s536 = sadd.s32 %s530, 1
            %s537 = sld [smem:[#allocation3 + %s536]]
            %v538 = vstv %s535
            %vm539 = vcmp.ge.s32.totalorder %v440, %v538
            %vm540 = vcmp.ge.s32.totalorder %v441, %v538
            %vm541 = vcmp.ge.s32.totalorder %v442, %v538
            %vm542 = vcmp.ge.s32.totalorder %v443, %v538
            %vm543 = vcmp.ge.s32.totalorder %v444, %v538
            %vm544 = vcmp.ge.s32.totalorder %v445, %v538
            %vm545 = vcmp.ge.s32.totalorder %v446, %v538
            %vm546 = vcmp.ge.s32.totalorder %v447, %v538
            %v547 = vstv %s537
            %vm548 = vcmp.lt.s32.totalorder %v440, %v547
            %vm549 = vcmp.lt.s32.totalorder %v441, %v547
            %vm550 = vcmp.lt.s32.totalorder %v442, %v547
            %vm551 = vcmp.lt.s32.totalorder %v443, %v547
            %vm552 = vcmp.lt.s32.totalorder %v444, %v547
            %vm553 = vcmp.lt.s32.totalorder %v445, %v547
            %vm554 = vcmp.lt.s32.totalorder %v446, %v547
            %vm555 = vcmp.lt.s32.totalorder %v447, %v547
            %vm556 = vmand %vm539, %vm548
            %vm557 = vmand %vm540, %vm549
            %vm558 = vmand %vm541, %vm550
            %vm559 = vmand %vm542, %vm551
            %vm560 = vmand %vm543, %vm552
            %vm561 = vmand %vm544, %vm553
            %vm562 = vmand %vm545, %vm554
            %vm563 = vmand %vm546, %vm555
            %v564 = vsel %vm556, 1, 0
            %v565 = vsel %vm557, 1, 0
            %v566 = vsel %vm558, 1, 0
            %v567 = vsel %vm559, 1, 0
            %v568 = vsel %vm560, 1, 0
            %v569 = vsel %vm561, 1, 0
            %v570 = vsel %vm562, 1, 0
            %v571 = vsel %vm563, 1, 0
            %vm572 = vcmp.eq.s32.totalorder %v564, 1
            %vm573 = vcmp.eq.s32.totalorder %v565, 1
            %vm574 = vcmp.eq.s32.totalorder %v566, 1
            %vm575 = vcmp.eq.s32.totalorder %v567, 1
            %vm576 = vcmp.eq.s32.totalorder %v568, 1
            %vm577 = vcmp.eq.s32.totalorder %v569, 1
            %vm578 = vcmp.eq.s32.totalorder %v570, 1
            %vm579 = vcmp.eq.s32.totalorder %v571, 1
            %v580 = vsel %vm572, %v410, -inf
            %v581 = vsel %vm573, %v412, -inf
            %v582 = vsel %vm574, %v415, -inf
            %v583 = vsel %vm575, %v417, -inf
            %v584 = vsel %vm576, %v420, -inf
            %v585 = vsel %vm577, %v422, -inf
            %v586 = vsel %vm578, %v425, -inf
            %v587 = vsel %vm579, %v427, -inf
            %v588 = vmax.f32 %v580, %v584
            %v589 = vmax.f32 %v581, %v585
            %v590 = vmax.f32 %v582, %v586
            %v591 = vmax.f32 %v583, %v587
            %v592 = vmax.f32 %v588, %v589
            %v593 = vmax.f32 %v590, %v591
            %v594 = vmax.f32 %v592, %v593
            %v595 = vrot.slane %v594, 4
            %v596 = vmax.f32 %v594, %v595
            %v597 = vrot.slane %v596, 2
            %v598 = vmax.f32 %v596, %v597
            %v599 = vrot.slane %v598, 1
            %v600 = vmax.f32 %v598, %v599
            %s601 = scalar_lea.vmem %s229, %s530 [#allocation6]
            %v602 = vld [vmem:[%s601] sm:$0x1]
            %v603 = vmax.f32 %v602, %v600
            %604 = vst [vmem:[%s601] sm:$0x1] %v603
          $region53: #{tpu_custom_call.1} parent=47 // loop_footer
            %s532 = sadd.s32 %s530, 1
          $region54: #{tpu_custom_call.1} parent=47 // loop_footer_branch
            %529 = sbr.rel target = $region50
          $region55: #{tpu_custom_call.1} parent=47 // loop_exit
            _
        $region48: #{tpu_custom_call.1} parent=35 // pred_fallthru
          _
        %s605 = sand.u32 %s150, 1
        %s606 = scalar_lea.sflag [#allocation7], %s605
        %s607 = sand.u32 %s150, 1
        %s608 = smul.addr %s607, 8
        %s609 = scalar_lea.vmem [#allocation6], %s608
        // Predicated region
        $region56: #{tpu_custom_call.1} parent=35 // pred_check
          %p610 = pneg %p160
        $region57: #{tpu_custom_call.1} parent=35 // pred_check_branch
          %612 = sbr.rel (%p610) target = $region59
        $region58: #{tpu_custom_call.1} parent=35 // pred_region
          %614 = vsyncadd %s606, 0
          %s615 = smul.addr %s43, 8
          %s616 = scalar_lea.hbm %s7, %s615
          %s618 = sshll.u32 %s609, 4
          %s619 = int_to_ptr.vmem [resolvable:$true] %s618
          %s620 = sshll.u32 %s616, 4
          %s621 = int_to_ptr.hbm [resolvable:$true] %s620
          %623 = dma.vmem_to_hbm [thread:$0]  %s619, 128, %s621, %s606
        $region59: #{tpu_custom_call.1} parent=35 // pred_fallthru
          _
      $region36: #{tpu_custom_call.1} parent=5 // pred_fallthru
        _
      %p624 = scmp.le.s32.totalorder 2, %s34
      // Predicated region
      $region60: #{tpu_custom_call.1} parent=5 // pred_check
        %p625 = pneg %p624
      $region61: #{tpu_custom_call.1} parent=5 // pred_check_branch
        %627 = sbr.rel (%p625) target = $region63
      $region62: #{tpu_custom_call.1} parent=5 // pred_region
        %s628 = ssub.s32 %s34, 2
        // Predicated region
        $region64: #{tpu_custom_call.1} parent=62 // pred_check
          %p629 = pneg %p166
        $region65: #{tpu_custom_call.1} parent=62 // pred_check_branch
          %631 = sbr.rel (%p629) target = $region67
        $region66: #{tpu_custom_call.1} parent=62 // pred_region
          %s632 = sand.u32 %s151, 1
          %s633 = scalar_lea.sflag [#allocation7], %s632
          %s634 = sand.u32 %s151, 1
          %s635 = smul.addr %s634, 8
          %s636 = scalar_lea.vmem [#allocation6], %s635
          %638 = dma.done %s633, 128
        $region67: #{tpu_custom_call.1} parent=62 // pred_fallthru
          _
      $region63: #{tpu_custom_call.1} parent=5 // pred_fallthru
        _
    $region6: #{tpu_custom_call.1} parent=1 // loop_footer
      %s38 = sadd.s32 1, %s34
    $region7: #{tpu_custom_call.1} parent=1 // loop_footer_branch
      %33 = sbr.rel target = $region3
    $region8: #{tpu_custom_call.1} parent=1 // loop_exit
      _
    %639 = vsyncpa [#allocation7], 1
    %s640 = scalar_lea.sflag [#allocation7], 1
    %641 = vsyncpa %s640, 1

</llo_original>
